<compile_context>
chip_gen: v7x
topology: tpu7x:2x2x1
jax: 0.10.0
libtpu: 0.0.40
codegen_flags: <defaults>
</compile_context>

<pallas_src>
import functools

import numpy as np
import jax
import jax.numpy as jnp
from jax.experimental import pallas as pl
from jax.experimental.pallas import tpu as pltpu

NEG_INF = float("-inf")


def _mention_scores_kernel(x_ref, w_ref, b_ref, pm_ref, out_ref, *, band, lpad):
    S = x_ref.shape[1]
    neg_inf = jnp.float32(NEG_INF)

    # Linear(D, 3) on the MXU in the encoder's native dtype (zero-padded to 128
    # lanes), f32 accumulation.
    x = x_ref[0]                                                           # (S, D)
    logits = jnp.dot(x, w_ref[...], preferred_element_type=jnp.float32)   # (S, 128) f32

    # Per-position masks from the int32 bitfield: bit0=mask_ctxt, bit1=starts, bit2=ends.
    pm = pm_ref[0]                                                         # (S, 1) int32
    mask_col = (pm & 1) > 0                                                # mask_ctxt
    base_v = (pm & 3) == 3                                                 # mask & token_starts
    ends_f = jnp.where((pm & 4) > 0, 1.0, 0.0)                             # token_ends (f32 0/1)

    # Bias only on the 3 useful columns (no full-width (S, 128) VALU add).
    start_col = logits[:, 0:1] + b_ref[:, 0:1]
    end_col = logits[:, 1:2] + b_ref[:, 1:2]
    ment_col = logits[:, 2:3] + b_ref[:, 2:3]

    start_m = jnp.where(mask_col, start_col, neg_inf)
    end_m = jnp.where(mask_col, end_col, neg_inf)
    ment0 = jnp.where(mask_col, ment_col, 0.0)        # masked -> 0 for the finite cumsum
    inval = jnp.where(mask_col, 0.0, 1.0)             # masked-position indicator

    # Inclusive prefix sums along the sequence: log2(S)-step Hillis-Steele scan on
    # one (S, 128) tile (lane 0 = masked mention logits, lane 1 = invalid count).
    # pltpu.roll lands on the XLU slot; no (S, S) constant, no f32 MXU pass.
    lane = jax.lax.broadcasted_iota(jnp.int32, (S, 128), 1)
    row = jax.lax.broadcasted_iota(jnp.int32, (S, 128), 0)
    acc = jnp.where(lane == 0, ment0, jnp.where(lane == 1, inval, 0.0))    # (S, 128)
    shift = 1
    while shift < S:
        rolled = pltpu.roll(acc, shift=shift, axis=0)       # rolled[i] = acc[(i - shift) % S]
        acc = acc + jnp.where(row >= shift, rolled, 0.0)    # kill the wrapped-around rows
        shift *= 2
    c_fin = acc[:, 0:1]                                # sum_{k<=i} ment0[k]
    c_cnt = acc[:, 1:2]                                # #masked positions k<=i
    c_col = jnp.where(c_cnt > 0.5, neg_inf, c_fin)     # mention_logprobs_end_cumsum
    p_col = jnp.where(c_cnt - inval > 0.5, neg_inf, c_fin - ment0)   # strict prefix

    a_col = start_m - p_col                            # start-index terms   A[i]
    b_col = end_m + c_col                              # end-index terms     B[j]

    # Banded result assembled fully in registers and written with ONE lane-dense
    # full-tile store:  result[i, d] = score(i, i + d) for d in [0, band).
    # One XLU roll per offset brings B[i+d] / ends[i+d] into row i; the validity
    # select is kept as jnp.where so the (-inf) - (-inf) NaNs never escape.
    lane_o = jax.lax.broadcasted_iota(jnp.int32, (S, lpad), 1)
    rowc = jax.lax.broadcasted_iota(jnp.int32, (S, 1), 0)
    packed = jnp.where(lane == 0, b_col, jnp.where(lane == 1, ends_f, 0.0))  # (S, 128)
    result = jnp.full((S, lpad), neg_inf, dtype=jnp.float32)
    for d in range(band):
        sh = packed if d == 0 else pltpu.roll(packed, shift=S - d, axis=0)
        b_shift = sh[:, 0:1]                           # B[(i + d) % S]
        ends_sh = sh[:, 1:2] > 0.5                     # token_ends[(i + d) % S]
        valid_d = base_v & ends_sh & (rowc < S - d)    # also kills the wrap-around rows
        col_d = jnp.where(valid_d, a_col + b_shift, neg_inf)        # (S, 1)
        result = jnp.where(lane_o == d, col_d, result)
    out_ref[0] = result                                # single unmasked (S, lpad) store


def mention_scores_head(text_encodings, mask_ctxt, tokens_mapping, weight, bias,
                        max_mention_length=10):
    """Returns (mention_scores (B, K) f32, mention_bounds (B, K, 2) int32)."""
    B, S, D = text_encodings.shape
    band = min(int(max_mention_length) + 1, S)        # offsets d = j - i in [0, max]
    lpad = ((band + 127) // 128) * 128                # lane-dense banded width (>= 128)
    dt = text_encodings.dtype

    # Weight / bias padded for the MXU; encodings stay in their native dtype.
    w_pad = jnp.zeros((D, 128), jnp.float32).at[:, :3].set(
        jnp.asarray(weight, jnp.float32).T).astype(dt)
    b_pad = jnp.zeros((1, 128), jnp.float32).at[0, :3].set(jnp.asarray(bias, jnp.float32))

    # token_starts / token_ends masks built with scatters in glue and packed with
    # mask_ctxt into one int32 bitfield per position (bit0 mask, bit1 starts, bit2 ends).
    bidx = jnp.arange(B)[:, None]
    starts_mask = (jnp.zeros((B, S), jnp.int32)
                   .at[bidx, tokens_mapping[:, :, 0]].set(1).at[:, 0].set(0))
    ends_mask = (jnp.zeros((B, S), jnp.int32)
                 .at[bidx, tokens_mapping[:, :, 1] - 1].set(1).at[:, 0].set(0))
    pmask = ((mask_ctxt != 0).astype(jnp.int32)
             + 2 * starts_mask + 4 * ends_mask)[..., None]          # (B, S, 1) int32

    kernel = functools.partial(_mention_scores_kernel, band=band, lpad=lpad)
    banded = pl.pallas_call(
        kernel,
        out_shape=jax.ShapeDtypeStruct((B, S, lpad), jnp.float32),
        grid_spec=pltpu.PrefetchScalarGridSpec(
            num_scalar_prefetch=0,
            grid=(B,),
            in_specs=[
                pl.BlockSpec((1, S, D), lambda b: (b, 0, 0)),    # encodings (native dtype)
                pl.BlockSpec((D, 128), lambda b: (0, 0)),        # padded weight (resident)
                pl.BlockSpec((1, 128), lambda b: (0, 0)),        # padded bias (resident)
                pl.BlockSpec((1, S, 1), lambda b: (b, 0, 0)),    # packed mask bitfield
            ],
            out_specs=pl.BlockSpec((1, S, lpad), lambda b: (b, 0, 0)),
        ),
        # No large resident constants remain, so the default scoped-VMEM limit is
        # ample on v5e/v6e/v7x at realistic (S, D); batch axis is megacore-parallel.
        compiler_params=pltpu.CompilerParams(
            dimension_semantics=("parallel",)),
    )(text_encodings, w_pad, b_pad, pmask)

    # ---- glue: map banded entries back to the module's flatten + filter order ----
    ii, jj = np.meshgrid(np.arange(S), np.arange(S), indexing="ij")
    keep = (jj - ii) <= max_mention_length            # same filter as filter_by_mention_size
    ii_k, jj_k = ii[keep], jj[keep]                    # row-major order == torch .view order
    src_idx = np.where(jj_k >= ii_k, ii_k * lpad + (jj_k - ii_k), S * lpad).astype(np.int32)
    pairs = np.stack([ii_k, jj_k], axis=-1).astype(np.int32)

    flat = banded.reshape(B, S * lpad)
    flat = jnp.concatenate([flat, jnp.full((B, 1), NEG_INF, jnp.float32)], axis=1)  # -inf sentinel
    mention_scores = flat[:, src_idx]
    mention_bounds = jnp.broadcast_to(jnp.asarray(pairs)[None], (B, pairs.shape[0], 2))
    return mention_scores, mention_bounds


def _reference(text_encodings, mask_ctxt, tokens_mapping, weight, bias, max_mention_length):
    """Pure-JAX reference mirroring the PyTorch forward, for verification."""
    B, S, D = text_encodings.shape
    neg_inf = jnp.float32(NEG_INF)
    logits = jnp.einsum("bsd,od->bso", text_encodings, weight) + bias
    valid = mask_ctxt == 1
    start = jnp.where(valid, logits[..., 0], neg_inf)
    end = jnp.where(valid, logits[..., 1], neg_inf)
    ment = jnp.where(valid, logits[..., 2], neg_inf)
    end_cum = jnp.cumsum(ment, axis=1)
    prev_cum = jnp.concatenate([jnp.zeros((B, 1), jnp.float32), end_cum[:, :-1]], axis=1)
    scores = (start[:, :, None] + end[:, None, :]) + (end_cum[:, None, :] - prev_cum[:, :, None])
    ii = jnp.arange(S)[:, None]
    jj = jnp.arange(S)[None, :]
    bidx = jnp.arange(B)[:, None]
    starts_mask = jnp.zeros((B, S), jnp.int32).at[bidx, tokens_mapping[:, :, 0]].set(1).at[:, 0].set(0)
    ends_mask = jnp.zeros((B, S), jnp.int32).at[bidx, tokens_mapping[:, :, 1] - 1].set(1).at[:, 0].set(0)
    valid_se = (starts_mask[:, :, None] * ends_mask[:, None, :]) > 0
    valid_mask = ((jj - ii + 1) > 0)[None] & (mask_ctxt[:, :, None] > 0) & valid_se
    scores = jnp.where(valid_mask, scores, neg_inf).reshape(B, S * S)
    ij = np.stack(np.meshgrid(np.arange(S), np.arange(S), indexing="ij"), axis=-1).reshape(-1, 2)
    keep = np.nonzero((ij[:, 1] - ij[:, 0]) <= max_mention_length)[0]
    bounds = jnp.broadcast_to(jnp.asarray(ij[keep], jnp.int32)[None], (B, keep.shape[0], 2))
    return scores[:, keep], bounds


if __name__ == "__main__":
    B, S, D, T = 2, 8, 32, 4
    MAX_MENTION_LEN = 4

    key = jax.random.PRNGKey(0)
    k1, k2, k3 = jax.random.split(key, 3)
    # bf16 encodings / weight (native MXU input dtype); bias stays f32.
    text_encodings = jax.random.normal(k1, (B, S, D), jnp.float32).astype(jnp.bfloat16)
    weight = (jax.random.normal(k2, (3, D), jnp.float32) * 0.1).astype(jnp.bfloat16)
    bias = jax.random.normal(k3, (3,), jnp.float32) * 0.1
    mask_ctxt = jnp.array([[1, 1, 1, 1, 1, 1, 0, 0],
                           [1, 1, 1, 1, 1, 1, 1, 0]], jnp.int32)
    tokens_mapping = jnp.array([[[1, 2], [2, 4], [4, 5], [5, 6]],
                                [[1, 3], [3, 4], [4, 6], [6, 7]]], jnp.int32)

    scores, bounds = mention_scores_head(text_encodings, mask_ctxt, tokens_mapping,
                                         weight, bias, MAX_MENTION_LEN)
    jax.block_until_ready((scores, bounds))

    ref_scores, ref_bounds = _reference(text_encodings.astype(jnp.float32), mask_ctxt,
                                        tokens_mapping, weight.astype(jnp.float32),
                                        bias, MAX_MENTION_LEN)
    np.testing.assert_allclose(np.asarray(scores), np.asarray(ref_scores),
                               rtol=1e-3, atol=1e-3)
    assert np.array_equal(np.asarray(bounds), np.asarray(ref_bounds))

    print("KERNEL_OK")
</pallas_src>

<mosaic_0001>
module attributes {stable_mosaic.version = 11 : i64} {
  func.func @_mention_scores_kernel(%arg0: i32, %arg1: memref<1x8x32xbf16, #tpu.memory_space<vmem>>, %arg2: memref<32x128xbf16, #tpu.memory_space<vmem>>, %arg3: memref<1x128xf32, #tpu.memory_space<vmem>>, %arg4: memref<1x8x1xi32, #tpu.memory_space<vmem>>, %arg5: memref<1x8x128xf32, #tpu.memory_space<vmem>>) attributes {dimension_semantics = [#tpu.dimension_semantics<parallel>], iteration_bounds = array<i64: 2>, scalar_prefetch = 0 : i64, scratch_operands = 0 : i64, tpu.core_type = #tpu.core_type<tc>, window_params = [{transform_indices = @transform_0, window_bounds = array<i64: 1, 8, 32>}, {pipeline_mode = #tpu.pipeline_mode<synchronous>, transform_indices = @transform_1, window_bounds = array<i64: 32, 128>}, {pipeline_mode = #tpu.pipeline_mode<synchronous>, transform_indices = @transform_2, window_bounds = array<i64: 1, 128>}, {transform_indices = @transform_3, window_bounds = array<i64: 1, 8, 1>}, {transform_indices = @transform_4, window_bounds = array<i64: 1, 8, 128>}]} {
    %c0 = arith.constant 0 : index
    %c0_0 = arith.constant 0 : index
    %c0_1 = arith.constant 0 : index
    %0 = vector.load %arg1[%c0, %c0_0, %c0_1] : memref<1x8x32xbf16, #tpu.memory_space<vmem>>, vector<1x8x32xbf16>
    %1 = vector.shape_cast %0 : vector<1x8x32xbf16> to vector<8x32xbf16>
    %c0_2 = arith.constant 0 : index
    %c0_3 = arith.constant 0 : index
    %2 = vector.load %arg2[%c0_2, %c0_3] : memref<32x128xbf16, #tpu.memory_space<vmem>>, vector<32x128xbf16>
    %cst = arith.constant dense<0.000000e+00> : vector<8x128xf32>
    %3 = tpu.matmul %1, %2, %cst {dimension_numbers = #tpu.dot_dimension_numbers<[1], [0], [0], [1], [0, 0, 1, 1], [], []>} : vector<8x32xbf16>, vector<32x128xbf16>, vector<8x128xf32> -> vector<8x128xf32>
    %c0_4 = arith.constant 0 : index
    %c0_5 = arith.constant 0 : index
    %c0_6 = arith.constant 0 : index
    %4 = vector.load %arg4[%c0_4, %c0_5, %c0_6] : memref<1x8x1xi32, #tpu.memory_space<vmem>>, vector<1x8x1xi32>
    %5 = vector.shape_cast %4 : vector<1x8x1xi32> to vector<8x1xi32>
    %c1_i32 = arith.constant 1 : i32
    %6 = vector.broadcast %c1_i32 : i32 to vector<8x1xi32>
    %7 = arith.andi %5, %6 : vector<8x1xi32>
    %c0_i32 = arith.constant 0 : i32
    %8 = vector.broadcast %c0_i32 : i32 to vector<8x1xi32>
    %9 = arith.cmpi sgt, %7, %8 : vector<8x1xi32>
    %c3_i32 = arith.constant 3 : i32
    %10 = vector.broadcast %c3_i32 : i32 to vector<8x1xi32>
    %11 = arith.andi %5, %10 : vector<8x1xi32>
    %c3_i32_7 = arith.constant 3 : i32
    %12 = vector.broadcast %c3_i32_7 : i32 to vector<8x1xi32>
    %13 = arith.cmpi eq, %11, %12 : vector<8x1xi32>
    %c4_i32 = arith.constant 4 : i32
    %14 = vector.broadcast %c4_i32 : i32 to vector<8x1xi32>
    %15 = arith.andi %5, %14 : vector<8x1xi32>
    %c0_i32_8 = arith.constant 0 : i32
    %16 = vector.broadcast %c0_i32_8 : i32 to vector<8x1xi32>
    %17 = arith.cmpi sgt, %15, %16 : vector<8x1xi32>
    %cst_9 = arith.constant 1.000000e+00 : f32
    %cst_10 = arith.constant 0.000000e+00 : f32
    %18 = vector.broadcast %cst_9 : f32 to vector<8x1xf32>
    %19 = vector.broadcast %cst_10 : f32 to vector<8x1xf32>
    %20 = arith.select %17, %18, %19 : vector<8x1xi1>, vector<8x1xf32>
    %21 = vector.extract_strided_slice %3 {offsets = [0, 0], sizes = [8, 1], strides = [1, 1]} : vector<8x128xf32> to vector<8x1xf32>
    %c0_11 = arith.constant 0 : index
    %c0_12 = arith.constant 0 : index
    %22 = vector.load %arg3[%c0_11, %c0_12] : memref<1x128xf32, #tpu.memory_space<vmem>>, vector<1x1xf32>
    %23 = vector.broadcast %22 : vector<1x1xf32> to vector<8x1xf32>
    %24 = arith.addf %21, %23 : vector<8x1xf32>
    %25 = vector.extract_strided_slice %3 {offsets = [0, 1], sizes = [8, 1], strides = [1, 1]} : vector<8x128xf32> to vector<8x1xf32>
    %c0_13 = arith.constant 0 : index
    %c1 = arith.constant 1 : index
    %26 = vector.load %arg3[%c0_13, %c1] : memref<1x128xf32, #tpu.memory_space<vmem>>, vector<1x1xf32>
    %27 = vector.broadcast %26 : vector<1x1xf32> to vector<8x1xf32>
    %28 = arith.addf %25, %27 : vector<8x1xf32>
    %29 = vector.extract_strided_slice %3 {offsets = [0, 2], sizes = [8, 1], strides = [1, 1]} : vector<8x128xf32> to vector<8x1xf32>
    %c0_14 = arith.constant 0 : index
    %c2 = arith.constant 2 : index
    %30 = vector.load %arg3[%c0_14, %c2] : memref<1x128xf32, #tpu.memory_space<vmem>>, vector<1x1xf32>
    %31 = vector.broadcast %30 : vector<1x1xf32> to vector<8x1xf32>
    %32 = arith.addf %29, %31 : vector<8x1xf32>
    %cst_15 = arith.constant 0xFF800000 : f32
    %33 = vector.broadcast %cst_15 : f32 to vector<8x1xf32>
    %34 = arith.select %9, %24, %33 : vector<8x1xi1>, vector<8x1xf32>
    %cst_16 = arith.constant 0xFF800000 : f32
    %35 = vector.broadcast %cst_16 : f32 to vector<8x1xf32>
    %36 = arith.select %9, %28, %35 : vector<8x1xi1>, vector<8x1xf32>
    %cst_17 = arith.constant 0.000000e+00 : f32
    %37 = vector.broadcast %cst_17 : f32 to vector<8x1xf32>
    %38 = arith.select %9, %32, %37 : vector<8x1xi1>, vector<8x1xf32>
    %cst_18 = arith.constant 0.000000e+00 : f32
    %cst_19 = arith.constant 1.000000e+00 : f32
    %39 = vector.broadcast %cst_18 : f32 to vector<8x1xf32>
    %40 = vector.broadcast %cst_19 : f32 to vector<8x1xf32>
    %41 = arith.select %9, %39, %40 : vector<8x1xi1>, vector<8x1xf32>
    %42 = tpu.iota {dimensions = array<i32: 1>} : vector<8x128xi32>
    %43 = tpu.iota {dimensions = array<i32: 0>} : vector<8x128xi32>
    %c0_i32_20 = arith.constant 0 : i32
    %44 = vector.broadcast %c0_i32_20 : i32 to vector<8x128xi32>
    %45 = arith.cmpi eq, %42, %44 : vector<8x128xi32>
    %c1_i32_21 = arith.constant 1 : i32
    %46 = vector.broadcast %c1_i32_21 : i32 to vector<8x128xi32>
    %47 = arith.cmpi eq, %42, %46 : vector<8x128xi32>
    %cst_22 = arith.constant 0.000000e+00 : f32
    %48 = vector.shape_cast %41 : vector<8x1xf32> to vector<8x1xf32>
    %49 = vector.broadcast %48 : vector<8x1xf32> to vector<8x128xf32>
    %50 = vector.broadcast %cst_22 : f32 to vector<8x128xf32>
    %51 = arith.select %47, %49, %50 : vector<8x128xi1>, vector<8x128xf32>
    %52 = vector.shape_cast %38 : vector<8x1xf32> to vector<8x1xf32>
    %53 = vector.broadcast %52 : vector<8x1xf32> to vector<8x128xf32>
    %54 = arith.select %45, %53, %51 : vector<8x128xi1>, vector<8x128xf32>
    %c1_i32_23 = arith.constant 1 : i32
    %55 = tpu.dynamic_rotate %54 by %c1_i32_23 dim 0 : vector<8x128xf32>, i32 -> vector<8x128xf32>
    %c1_i32_24 = arith.constant 1 : i32
    %56 = vector.broadcast %c1_i32_24 : i32 to vector<8x128xi32>
    %57 = arith.cmpi sge, %43, %56 : vector<8x128xi32>
    %cst_25 = arith.constant 0.000000e+00 : f32
    %58 = vector.broadcast %cst_25 : f32 to vector<8x128xf32>
    %59 = arith.select %57, %55, %58 : vector<8x128xi1>, vector<8x128xf32>
    %60 = arith.addf %54, %59 : vector<8x128xf32>
    %c2_i32 = arith.constant 2 : i32
    %61 = tpu.dynamic_rotate %60 by %c2_i32 dim 0 : vector<8x128xf32>, i32 -> vector<8x128xf32>
    %c2_i32_26 = arith.constant 2 : i32
    %62 = vector.broadcast %c2_i32_26 : i32 to vector<8x128xi32>
    %63 = arith.cmpi sge, %43, %62 : vector<8x128xi32>
    %cst_27 = arith.constant 0.000000e+00 : f32
    %64 = vector.broadcast %cst_27 : f32 to vector<8x128xf32>
    %65 = arith.select %63, %61, %64 : vector<8x128xi1>, vector<8x128xf32>
    %66 = arith.addf %60, %65 : vector<8x128xf32>
    %c4_i32_28 = arith.constant 4 : i32
    %67 = tpu.dynamic_rotate %66 by %c4_i32_28 dim 0 : vector<8x128xf32>, i32 -> vector<8x128xf32>
    %c4_i32_29 = arith.constant 4 : i32
    %68 = vector.broadcast %c4_i32_29 : i32 to vector<8x128xi32>
    %69 = arith.cmpi sge, %43, %68 : vector<8x128xi32>
    %cst_30 = arith.constant 0.000000e+00 : f32
    %70 = vector.broadcast %cst_30 : f32 to vector<8x128xf32>
    %71 = arith.select %69, %67, %70 : vector<8x128xi1>, vector<8x128xf32>
    %72 = arith.addf %66, %71 : vector<8x128xf32>
    %73 = vector.extract_strided_slice %72 {offsets = [0, 0], sizes = [8, 1], strides = [1, 1]} : vector<8x128xf32> to vector<8x1xf32>
    %74 = vector.extract_strided_slice %72 {offsets = [0, 1], sizes = [8, 1], strides = [1, 1]} : vector<8x128xf32> to vector<8x1xf32>
    %cst_31 = arith.constant 5.000000e-01 : f32
    %75 = vector.broadcast %cst_31 : f32 to vector<8x1xf32>
    %76 = arith.cmpf ogt, %74, %75 : vector<8x1xf32>
    %cst_32 = arith.constant 0xFF800000 : f32
    %77 = vector.broadcast %cst_32 : f32 to vector<8x1xf32>
    %78 = arith.select %76, %77, %73 : vector<8x1xi1>, vector<8x1xf32>
    %79 = arith.subf %74, %41 : vector<8x1xf32>
    %cst_33 = arith.constant 5.000000e-01 : f32
    %80 = vector.broadcast %cst_33 : f32 to vector<8x1xf32>
    %81 = arith.cmpf ogt, %79, %80 : vector<8x1xf32>
    %82 = arith.subf %73, %38 : vector<8x1xf32>
    %cst_34 = arith.constant 0xFF800000 : f32
    %83 = vector.broadcast %cst_34 : f32 to vector<8x1xf32>
    %84 = arith.select %81, %83, %82 : vector<8x1xi1>, vector<8x1xf32>
    %85 = arith.subf %34, %84 : vector<8x1xf32>
    %86 = arith.addf %36, %78 : vector<8x1xf32>
    %87 = tpu.iota {dimensions = array<i32: 1>} : vector<8x128xi32>
    %88 = tpu.iota {dimensions = array<i32: 0>} : vector<8x1xi32>
    %c0_i32_35 = arith.constant 0 : i32
    %89 = vector.broadcast %c0_i32_35 : i32 to vector<8x128xi32>
    %90 = arith.cmpi eq, %42, %89 : vector<8x128xi32>
    %c1_i32_36 = arith.constant 1 : i32
    %91 = vector.broadcast %c1_i32_36 : i32 to vector<8x128xi32>
    %92 = arith.cmpi eq, %42, %91 : vector<8x128xi32>
    %cst_37 = arith.constant 0.000000e+00 : f32
    %93 = vector.shape_cast %20 : vector<8x1xf32> to vector<8x1xf32>
    %94 = vector.broadcast %93 : vector<8x1xf32> to vector<8x128xf32>
    %95 = vector.broadcast %cst_37 : f32 to vector<8x128xf32>
    %96 = arith.select %92, %94, %95 : vector<8x128xi1>, vector<8x128xf32>
    %97 = vector.shape_cast %86 : vector<8x1xf32> to vector<8x1xf32>
    %98 = vector.broadcast %97 : vector<8x1xf32> to vector<8x128xf32>
    %99 = arith.select %90, %98, %96 : vector<8x128xi1>, vector<8x128xf32>
    %cst_38 = arith.constant 0xFF800000 : f32
    %100 = vector.broadcast %cst_38 : f32 to vector<8x128xf32>
    %101 = vector.extract_strided_slice %99 {offsets = [0, 0], sizes = [8, 1], strides = [1, 1]} : vector<8x128xf32> to vector<8x1xf32>
    %102 = vector.extract_strided_slice %99 {offsets = [0, 1], sizes = [8, 1], strides = [1, 1]} : vector<8x128xf32> to vector<8x1xf32>
    %cst_39 = arith.constant 5.000000e-01 : f32
    %103 = vector.broadcast %cst_39 : f32 to vector<8x1xf32>
    %104 = arith.cmpf ogt, %102, %103 : vector<8x1xf32>
    %105 = arith.andi %13, %104 : vector<8x1xi1>
    %c8_i32 = arith.constant 8 : i32
    %106 = vector.broadcast %c8_i32 : i32 to vector<8x1xi32>
    %107 = arith.cmpi slt, %88, %106 : vector<8x1xi32>
    %108 = arith.andi %105, %107 : vector<8x1xi1>
    %109 = arith.addf %85, %101 : vector<8x1xf32>
    %cst_40 = arith.constant 0xFF800000 : f32
    %110 = vector.broadcast %cst_40 : f32 to vector<8x1xf32>
    %111 = arith.select %108, %109, %110 : vector<8x1xi1>, vector<8x1xf32>
    %c0_i32_41 = arith.constant 0 : i32
    %112 = vector.broadcast %c0_i32_41 : i32 to vector<8x128xi32>
    %113 = arith.cmpi eq, %87, %112 : vector<8x128xi32>
    %114 = vector.shape_cast %111 : vector<8x1xf32> to vector<8x1xf32>
    %115 = vector.broadcast %114 : vector<8x1xf32> to vector<8x128xf32>
    %116 = arith.select %113, %115, %100 : vector<8x128xi1>, vector<8x128xf32>
    %c7_i32 = arith.constant 7 : i32
    %117 = tpu.dynamic_rotate %99 by %c7_i32 dim 0 : vector<8x128xf32>, i32 -> vector<8x128xf32>
    %118 = vector.extract_strided_slice %117 {offsets = [0, 0], sizes = [8, 1], strides = [1, 1]} : vector<8x128xf32> to vector<8x1xf32>
    %119 = vector.extract_strided_slice %117 {offsets = [0, 1], sizes = [8, 1], strides = [1, 1]} : vector<8x128xf32> to vector<8x1xf32>
    %cst_42 = arith.constant 5.000000e-01 : f32
    %120 = vector.broadcast %cst_42 : f32 to vector<8x1xf32>
    %121 = arith.cmpf ogt, %119, %120 : vector<8x1xf32>
    %122 = arith.andi %13, %121 : vector<8x1xi1>
    %c7_i32_43 = arith.constant 7 : i32
    %123 = vector.broadcast %c7_i32_43 : i32 to vector<8x1xi32>
    %124 = arith.cmpi slt, %88, %123 : vector<8x1xi32>
    %125 = arith.andi %122, %124 : vector<8x1xi1>
    %126 = arith.addf %85, %118 : vector<8x1xf32>
    %cst_44 = arith.constant 0xFF800000 : f32
    %127 = vector.broadcast %cst_44 : f32 to vector<8x1xf32>
    %128 = arith.select %125, %126, %127 : vector<8x1xi1>, vector<8x1xf32>
    %c1_i32_45 = arith.constant 1 : i32
    %129 = vector.broadcast %c1_i32_45 : i32 to vector<8x128xi32>
    %130 = arith.cmpi eq, %87, %129 : vector<8x128xi32>
    %131 = vector.shape_cast %128 : vector<8x1xf32> to vector<8x1xf32>
    %132 = vector.broadcast %131 : vector<8x1xf32> to vector<8x128xf32>
    %133 = arith.select %130, %132, %116 : vector<8x128xi1>, vector<8x128xf32>
    %c6_i32 = arith.constant 6 : i32
    %134 = tpu.dynamic_rotate %99 by %c6_i32 dim 0 : vector<8x128xf32>, i32 -> vector<8x128xf32>
    %135 = vector.extract_strided_slice %134 {offsets = [0, 0], sizes = [8, 1], strides = [1, 1]} : vector<8x128xf32> to vector<8x1xf32>
    %136 = vector.extract_strided_slice %134 {offsets = [0, 1], sizes = [8, 1], strides = [1, 1]} : vector<8x128xf32> to vector<8x1xf32>
    %cst_46 = arith.constant 5.000000e-01 : f32
    %137 = vector.broadcast %cst_46 : f32 to vector<8x1xf32>
    %138 = arith.cmpf ogt, %136, %137 : vector<8x1xf32>
    %139 = arith.andi %13, %138 : vector<8x1xi1>
    %c6_i32_47 = arith.constant 6 : i32
    %140 = vector.broadcast %c6_i32_47 : i32 to vector<8x1xi32>
    %141 = arith.cmpi slt, %88, %140 : vector<8x1xi32>
    %142 = arith.andi %139, %141 : vector<8x1xi1>
    %143 = arith.addf %85, %135 : vector<8x1xf32>
    %cst_48 = arith.constant 0xFF800000 : f32
    %144 = vector.broadcast %cst_48 : f32 to vector<8x1xf32>
    %145 = arith.select %142, %143, %144 : vector<8x1xi1>, vector<8x1xf32>
    %c2_i32_49 = arith.constant 2 : i32
    %146 = vector.broadcast %c2_i32_49 : i32 to vector<8x128xi32>
    %147 = arith.cmpi eq, %87, %146 : vector<8x128xi32>
    %148 = vector.shape_cast %145 : vector<8x1xf32> to vector<8x1xf32>
    %149 = vector.broadcast %148 : vector<8x1xf32> to vector<8x128xf32>
    %150 = arith.select %147, %149, %133 : vector<8x128xi1>, vector<8x128xf32>
    %c5_i32 = arith.constant 5 : i32
    %151 = tpu.dynamic_rotate %99 by %c5_i32 dim 0 : vector<8x128xf32>, i32 -> vector<8x128xf32>
    %152 = vector.extract_strided_slice %151 {offsets = [0, 0], sizes = [8, 1], strides = [1, 1]} : vector<8x128xf32> to vector<8x1xf32>
    %153 = vector.extract_strided_slice %151 {offsets = [0, 1], sizes = [8, 1], strides = [1, 1]} : vector<8x128xf32> to vector<8x1xf32>
    %cst_50 = arith.constant 5.000000e-01 : f32
    %154 = vector.broadcast %cst_50 : f32 to vector<8x1xf32>
    %155 = arith.cmpf ogt, %153, %154 : vector<8x1xf32>
    %156 = arith.andi %13, %155 : vector<8x1xi1>
    %c5_i32_51 = arith.constant 5 : i32
    %157 = vector.broadcast %c5_i32_51 : i32 to vector<8x1xi32>
    %158 = arith.cmpi slt, %88, %157 : vector<8x1xi32>
    %159 = arith.andi %156, %158 : vector<8x1xi1>
    %160 = arith.addf %85, %152 : vector<8x1xf32>
    %cst_52 = arith.constant 0xFF800000 : f32
    %161 = vector.broadcast %cst_52 : f32 to vector<8x1xf32>
    %162 = arith.select %159, %160, %161 : vector<8x1xi1>, vector<8x1xf32>
    %c3_i32_53 = arith.constant 3 : i32
    %163 = vector.broadcast %c3_i32_53 : i32 to vector<8x128xi32>
    %164 = arith.cmpi eq, %87, %163 : vector<8x128xi32>
    %165 = vector.shape_cast %162 : vector<8x1xf32> to vector<8x1xf32>
    %166 = vector.broadcast %165 : vector<8x1xf32> to vector<8x128xf32>
    %167 = arith.select %164, %166, %150 : vector<8x128xi1>, vector<8x128xf32>
    %c4_i32_54 = arith.constant 4 : i32
    %168 = tpu.dynamic_rotate %99 by %c4_i32_54 dim 0 : vector<8x128xf32>, i32 -> vector<8x128xf32>
    %169 = vector.extract_strided_slice %168 {offsets = [0, 0], sizes = [8, 1], strides = [1, 1]} : vector<8x128xf32> to vector<8x1xf32>
    %170 = vector.extract_strided_slice %168 {offsets = [0, 1], sizes = [8, 1], strides = [1, 1]} : vector<8x128xf32> to vector<8x1xf32>
    %cst_55 = arith.constant 5.000000e-01 : f32
    %171 = vector.broadcast %cst_55 : f32 to vector<8x1xf32>
    %172 = arith.cmpf ogt, %170, %171 : vector<8x1xf32>
    %173 = arith.andi %13, %172 : vector<8x1xi1>
    %c4_i32_56 = arith.constant 4 : i32
    %174 = vector.broadcast %c4_i32_56 : i32 to vector<8x1xi32>
    %175 = arith.cmpi slt, %88, %174 : vector<8x1xi32>
    %176 = arith.andi %173, %175 : vector<8x1xi1>
    %177 = arith.addf %85, %169 : vector<8x1xf32>
    %cst_57 = arith.constant 0xFF800000 : f32
    %178 = vector.broadcast %cst_57 : f32 to vector<8x1xf32>
    %179 = arith.select %176, %177, %178 : vector<8x1xi1>, vector<8x1xf32>
    %c4_i32_58 = arith.constant 4 : i32
    %180 = vector.broadcast %c4_i32_58 : i32 to vector<8x128xi32>
    %181 = arith.cmpi eq, %87, %180 : vector<8x128xi32>
    %182 = vector.shape_cast %179 : vector<8x1xf32> to vector<8x1xf32>
    %183 = vector.broadcast %182 : vector<8x1xf32> to vector<8x128xf32>
    %184 = arith.select %181, %183, %167 : vector<8x128xi1>, vector<8x128xf32>
    %c0_59 = arith.constant 0 : index
    %c0_60 = arith.constant 0 : index
    %c0_61 = arith.constant 0 : index
    %185 = vector.load %arg5[%c0_59, %c0_60, %c0_61] : memref<1x8x128xf32, #tpu.memory_space<vmem>>, vector<1x8x128xf32>
    %186 = vector.shape_cast %185 : vector<1x8x128xf32> to vector<8x128xf32>
    %187 = vector.shape_cast %184 : vector<8x128xf32> to vector<1x8x128xf32>
    tpu.vector_store %arg5[%c0_59, %c0_60, %c0_61], %187 {strides = array<i32>} : memref<1x8x128xf32, #tpu.memory_space<vmem>>, vector<1x8x128xf32>,
    return
  }
  func.func @transform_0(%arg0: i32) -> (i32, i32, i32) {
    %c0_i32 = arith.constant 0 : i32
    %c0_i32_0 = arith.constant 0 : i32
    %c0_i32_1 = arith.constant 0 : i32
    return %arg0, %c0_i32, %c0_i32_0 : i32, i32, i32
  }
  func.func @transform_1(%arg0: i32) -> (i32, i32) {
    %c0_i32 = arith.constant 0 : i32
    %c0_i32_0 = arith.constant 0 : i32
    %c0_i32_1 = arith.constant 0 : i32
    return %c0_i32, %c0_i32_0 : i32, i32
  }
  func.func @transform_2(%arg0: i32) -> (i32, i32) {
    %c0_i32 = arith.constant 0 : i32
    %c0_i32_0 = arith.constant 0 : i32
    %c0_i32_1 = arith.constant 0 : i32
    return %c0_i32, %c0_i32_0 : i32, i32
  }
  func.func @transform_3(%arg0: i32) -> (i32, i32, i32) {
    %c0_i32 = arith.constant 0 : i32
    %c0_i32_0 = arith.constant 0 : i32
    %c0_i32_1 = arith.constant 0 : i32
    return %arg0, %c0_i32, %c0_i32_0 : i32, i32, i32
  }
  func.func @transform_4(%arg0: i32) -> (i32, i32, i32) {
    %c0_i32 = arith.constant 0 : i32
    %c0_i32_0 = arith.constant 0 : i32
    %c0_i32_1 = arith.constant 0 : i32
    return %arg0, %c0_i32, %c0_i32_0 : i32, i32, i32
  }
}

</mosaic_0001>

<llo_original>
// kernel: tpu_custom_call.1
$region0: #{tpu_custom_call.1}
  #allocation0 [shape = 'u32[]', space=smem, size = 0x4, offset = 0x4, fixed_abs, tag = 'smem constant byte address 0x4 - core index']
  #allocation1 [shape = 'u32[144,128]{1,0:T(1,128)}', space=vmem, size = 0x12000, scoped, tag = 'internal scratch']
  %s0 = inlined_call_operand.hbm [shape: bf16[2,8,32], index: 0, kind: input, shape index: {}]
  %s1 = inlined_call_operand.vmem [shape: bf16[32,128], index: 1, kind: input, shape index: {}]
  %s2 = inlined_call_operand.vmem [shape: f32[1,128], index: 2, kind: input, shape index: {}]
  %s3 = inlined_call_operand.vmem [shape: s32[2,8,1], index: 3, kind: input, shape index: {}]
  %s4 = inlined_call_operand.hbm [shape: f32[2,8,128], index: 4, kind: output, shape index: {}]
  %s5 = sld [smem:[#allocation0]]
  $region53: #{tpu_custom_call.1} parent=0
    _
  %s7 = ssub.s32 1, %s5
  %s8 = scalar_select 0, %s7, %s5
  $region1: #{tpu_custom_call.1} parent=0
    #allocation2 [shape = 'u8[4096]{0}', space=vmem, size = 0x1000, scoped, tag = 'input window, operand 0']
    #allocation3 [shape = 's32[2]{0}', space=sflag, size = 0x8, scoped, tag = 'scoped memory for tpu_custom_call.1']
    #allocation4 [shape = 's32[2]{0}', space=sflag, size = 0x8, scoped, tag = 'scoped memory for tpu_custom_call.1']
    #allocation5 [shape = 'u8[8192]{0}', space=vmem, size = 0x2000, scoped, tag = 'output window, operand 0']
    %9 = vsyncpa [#allocation3], 0
    %s10 = scalar_lea.sflag [#allocation3], 1
    %11 = vsyncpa %s10, 0
    %12 = vsyncpa [#allocation4], 0
    %s13 = scalar_lea.sflag [#allocation4], 1
    %14 = vsyncpa %s13, 0
    loop: start=0, step=1, limit=4
    $region2: #{tpu_custom_call.1} parent=1 // loop_pre_header
      _
    $region3: #{tpu_custom_call.1} parent=1 // loop_header
      %s16 = sphi 0, %s20
      %p17 = scmp.ge.s32.totalorder %s16, 4
      %s26 = sphi 0, %s28
      %s29 = sphi 0, %s26
      %s30 = sphi 0, %s29
      %s46 = sphi 0, %s30
      %s50 = sphi 0, %s50
      %s52 = sphi 0, %s50
      %s53 = sphi 0, %s52
      %s67 = sphi 0, %s53
      %s71 = sphi 0, %s71
      %s73 = sphi 0, %s71
      %s74 = sphi 0, %s73
      %s88 = sphi 0, %s74
      %s94 = sphi 0, %s96
      %s97 = sphi 0, %s94
      %s98 = sphi 0, %s97
      %s114 = sphi 0, %s98
      %s120 = sphi 0, %s122
      %s123 = sphi 0, %s120
      %s124 = sphi 0, %s123
      %s140 = sphi 0, %s124
    $region4: #{tpu_custom_call.1} parent=1 // loop_header_branch
      %19 = sbr.rel (%p17) target = $region8
    $region5: #{tpu_custom_call.1} parent=1 // loop_body
      %s21 = ssub.s32 %s16, 1
      %s22 = ssub.s32 %s16, 2
      %s23 = sadd.s32 %s16, 1
      %s24 = ssub.s32 %s16, %s23
      %p25 = scmp.eq.s32.totalorder %s24, 0
      %s27 = sadd.s32 %s26, 1
      %s28 = scalar_select %p25, %s26, %s27
      %p31 = pneg %p25
      %p32 = scmp.eq.s32.totalorder %s16, 1
      %p33 = por %p31, %p32
      %p34 = scmp.ne.s32.totalorder %s26, %s29
      %p35 = scmp.eq.s32.totalorder %s16, 0
      %p36 = por %p34, %p35
      %p37 = scmp.ne.s32.totalorder %s26, %s29
      %p38 = scmp.eq.s32.totalorder %s21, 1
      %p39 = por %p37, %p38
      %p40 = scmp.ne.s32.totalorder %s29, %s30
      %p41 = scmp.eq.s32.totalorder %s21, 0
      %p42 = por %p40, %p41
      %p43 = scmp.ne.s32.totalorder %s29, %s30
      %p44 = scmp.eq.s32.totalorder %s22, 1
      %p45 = por %p43, %p44
      %p47 = scmp.ne.s32.totalorder %s30, %s46
      %p48 = scmp.eq.s32.totalorder %s22, 0
      %p49 = por %p47, %p48
      %s51 = sadd.s32 %s50, 1
      %p54 = scmp.eq.s32.totalorder %s16, 1
      %p55 = scmp.ne.s32.totalorder %s50, %s52
      %p56 = scmp.eq.s32.totalorder %s16, 0
      %p57 = por %p55, %p56
      %p58 = scmp.ne.s32.totalorder %s50, %s52
      %p59 = scmp.eq.s32.totalorder %s21, 1
      %p60 = por %p58, %p59
      %p61 = scmp.ne.s32.totalorder %s52, %s53
      %p62 = scmp.eq.s32.totalorder %s21, 0
      %p63 = por %p61, %p62
      %p64 = scmp.ne.s32.totalorder %s52, %s53
      %p65 = scmp.eq.s32.totalorder %s22, 1
      %p66 = por %p64, %p65
      %p68 = scmp.ne.s32.totalorder %s53, %s67
      %p69 = scmp.eq.s32.totalorder %s22, 0
      %p70 = por %p68, %p69
      %s72 = sadd.s32 %s71, 1
      %p75 = scmp.eq.s32.totalorder %s16, 1
      %p76 = scmp.ne.s32.totalorder %s71, %s73
      %p77 = scmp.eq.s32.totalorder %s16, 0
      %p78 = por %p76, %p77
      %p79 = scmp.ne.s32.totalorder %s71, %s73
      %p80 = scmp.eq.s32.totalorder %s21, 1
      %p81 = por %p79, %p80
      %p82 = scmp.ne.s32.totalorder %s73, %s74
      %p83 = scmp.eq.s32.totalorder %s21, 0
      %p84 = por %p82, %p83
      %p85 = scmp.ne.s32.totalorder %s73, %s74
      %p86 = scmp.eq.s32.totalorder %s22, 1
      %p87 = por %p85, %p86
      %p89 = scmp.ne.s32.totalorder %s74, %s88
      %p90 = scmp.eq.s32.totalorder %s22, 0
      %p91 = por %p89, %p90
      %s92 = ssub.s32 %s16, %s23
      %p93 = scmp.eq.s32.totalorder %s92, 0
      %s95 = sadd.s32 %s94, 1
      %s96 = scalar_select %p93, %s94, %s95
      %p99 = pneg %p93
      %p100 = scmp.eq.s32.totalorder %s16, 1
      %p101 = por %p99, %p100
      %p102 = scmp.ne.s32.totalorder %s94, %s97
      %p103 = scmp.eq.s32.totalorder %s16, 0
      %p104 = por %p102, %p103
      %p105 = scmp.ne.s32.totalorder %s94, %s97
      %p106 = scmp.eq.s32.totalorder %s21, 1
      %p107 = por %p105, %p106
      %p108 = scmp.ne.s32.totalorder %s97, %s98
      %p109 = scmp.eq.s32.totalorder %s21, 0
      %p110 = por %p108, %p109
      %p111 = scmp.ne.s32.totalorder %s97, %s98
      %p112 = scmp.eq.s32.totalorder %s22, 1
      %p113 = por %p111, %p112
      %p115 = scmp.ne.s32.totalorder %s98, %s114
      %p116 = scmp.eq.s32.totalorder %s22, 0
      %p117 = por %p115, %p116
      %s118 = ssub.s32 %s16, %s23
      %p119 = scmp.eq.s32.totalorder %s118, 0
      %s121 = sadd.s32 %s120, 1
      %s122 = scalar_select %p119, %s120, %s121
      %p125 = pneg %p119
      %p126 = scmp.eq.s32.totalorder %s16, 1
      %p127 = por %p125, %p126
      %p128 = scmp.ne.s32.totalorder %s120, %s123
      %p129 = scmp.eq.s32.totalorder %s16, 0
      %p130 = por %p128, %p129
      %p131 = scmp.ne.s32.totalorder %s120, %s123
      %p132 = scmp.eq.s32.totalorder %s21, 1
      %p133 = por %p131, %p132
      %p134 = scmp.ne.s32.totalorder %s123, %s124
      %p135 = scmp.eq.s32.totalorder %s21, 0
      %p136 = por %p134, %p135
      %p137 = scmp.ne.s32.totalorder %s123, %s124
      %p138 = scmp.eq.s32.totalorder %s22, 1
      %p139 = por %p137, %p138
      %p141 = scmp.ne.s32.totalorder %s124, %s140
      %p142 = scmp.eq.s32.totalorder %s22, 0
      %p143 = por %p141, %p142
      %p144 = scmp.le.s32.totalorder 1, %s16
      %p145 = scmp.lt.s32.totalorder %s16, 3
      %p146 = pnand %p144, %p145
      %p147 = pneg %p146
      // Predicated region
      $region9: #{tpu_custom_call.1} parent=5 // pred_check
        _
      $region10: #{tpu_custom_call.1} parent=5 // pred_check_branch
        %149 = sbr.rel (%p146) target = $region12
      $region11: #{tpu_custom_call.1} parent=5 // pred_region
        %s150 = ssub.s32 %s16, 1
        // Predicated region
        $region13: #{tpu_custom_call.1} parent=11 // pred_check
          %p151 = pneg %p63
        $region14: #{tpu_custom_call.1} parent=11 // pred_check_branch
          %153 = sbr.rel (%p151) target = $region16
        $region15: #{tpu_custom_call.1} parent=11 // pred_region
          _
        $region16: #{tpu_custom_call.1} parent=11 // pred_fallthru
          _
        // Predicated region
        $region17: #{tpu_custom_call.1} parent=11 // pred_check
          %p154 = pneg %p84
        $region18: #{tpu_custom_call.1} parent=11 // pred_check_branch
          %156 = sbr.rel (%p154) target = $region20
        $region19: #{tpu_custom_call.1} parent=11 // pred_region
          _
        $region20: #{tpu_custom_call.1} parent=11 // pred_fallthru
          _
      $region12: #{tpu_custom_call.1} parent=5 // pred_fallthru
        _
      %p157 = scmp.lt.s32.totalorder %s16, 2
      // Predicated region
      $region21: #{tpu_custom_call.1} parent=5 // pred_check
        %p158 = pneg %p157
      $region22: #{tpu_custom_call.1} parent=5 // pred_check_branch
        %160 = sbr.rel (%p158) target = $region24
      $region23: #{tpu_custom_call.1} parent=5 // pred_region
        // Predicated region
        $region25: #{tpu_custom_call.1} parent=23 // pred_check
          %p161 = pneg %p36
        $region26: #{tpu_custom_call.1} parent=23 // pred_check_branch
          %163 = sbr.rel (%p161) target = $region28
        $region27: #{tpu_custom_call.1} parent=23 // pred_region
          %s164 = sand.u32 %s26, 1
          %s165 = scalar_lea.sflag [#allocation3], %s164
          %s166 = sand.u32 %s26, 1
          %s167 = smul.addr %s166, 4
          %s168 = scalar_lea.vmem [#allocation2], %s167
          %s170 = ssub.s32 64, 64
          %171 = vsyncadd %s165, %s170
          %s172 = smul.addr %s16, 64
          %s173 = scalar_lea.hbm %s0, %s172
          %s175 = sshll.u32 %s168, 4
          %s176 = int_to_ptr.vmem [resolvable:$true] %s175
          %178 = dma.hbm_to_vmem [thread:$0]  %s173, 64, %s176, %s165
        $region28: #{tpu_custom_call.1} parent=23 // pred_fallthru
          _
        // Predicated region
        $region29: #{tpu_custom_call.1} parent=23 // pred_check
          %p179 = pneg %p104
        $region30: #{tpu_custom_call.1} parent=23 // pred_check_branch
          %181 = sbr.rel (%p179) target = $region32
        $region31: #{tpu_custom_call.1} parent=23 // pred_region
          %p182 = scmp.lt.s32.totalorder %s16, 1
          %s183 = scalar_select %p182, %s16, 1
          %s184 = smul.addr %s183, 8
          %s185 = scalar_lea.vmem %s3, %s184
        $region32: #{tpu_custom_call.1} parent=23 // pred_fallthru
          _
      $region24: #{tpu_custom_call.1} parent=5 // pred_fallthru
        _
      %p186 = scmp.le.s32.totalorder 1, %s16
      %p187 = scmp.lt.s32.totalorder %s16, 3
      %p188 = pnand %p186, %p187
      %p189 = pneg %p188
      // Predicated region
      $region33: #{tpu_custom_call.1} parent=5 // pred_check
        _
      $region34: #{tpu_custom_call.1} parent=5 // pred_check_branch
        %191 = sbr.rel (%p188) target = $region36
      $region35: #{tpu_custom_call.1} parent=5 // pred_region
        %s192 = ssub.s32 %s16, 1
        %s193 = sand.u32 %s29, 1
        %s194 = scalar_lea.sflag [#allocation3], %s193
        %s195 = sand.u32 %s29, 1
        %s196 = smul.addr %s195, 4
        %s197 = scalar_lea.vmem [#allocation2], %s196
        // Predicated region
        $region37: #{tpu_custom_call.1} parent=35 // pred_check
          %p198 = pneg %p42
        $region38: #{tpu_custom_call.1} parent=35 // pred_check_branch
          %200 = sbr.rel (%p198) target = $region40
        $region39: #{tpu_custom_call.1} parent=35 // pred_region
          %201 = dma.done %s194, 64
        $region40: #{tpu_custom_call.1} parent=35 // pred_fallthru
          _
        %s202 = sand.u32 %s29, 1
        %s203 = scalar_lea.sflag [#allocation3], %s202
        %s204 = sand.u32 %s29, 1
        %s205 = smul.addr %s204, 4
        %s206 = scalar_lea.vmem [#allocation2], %s205
        %p207 = pneg %p42
        %p208 = pneg %p39
        %p209 = pneg %p63
        %p210 = pneg %p60
        %p211 = pneg %p84
        %p212 = pneg %p81
        %p213 = scmp.lt.s32.totalorder %s21, 1
        %s214 = scalar_select %p213, %s21, 1
        %s215 = smul.addr %s214, 8
        %s216 = scalar_lea.vmem %s3, %s215
        %p217 = pneg %p110
        %p218 = pneg %p107
        %p219 = pneg %p136
        %p220 = pneg %p133
        %s221 = sand.u32 %s123, 1
        %s222 = scalar_lea.sflag [#allocation4], %s221
        %s223 = sand.u32 %s123, 1
        %s224 = smul.addr %s223, 8
        %s225 = scalar_lea.vmem [#allocation5], %s224
        %p226 = scmp.lt.s32.totalorder %s21, 1
        %s227 = scalar_select %p226, %s21, 1
        %s228 = smul.addr %s227, 8
        %s229 = scalar_lea.vmem %s3, %s228
        %v231 = vld [vmem:[%s197] sm:$0xf]
        %v232 = vld [vmem:[%s1] sm:$0xf]
        %v233 = vld [vmem:[%s1 + $0x4] sm:$0xf]
        %v234 = vld [vmem:[%s1 + $0x8] sm:$0xf]
        %v235 = vld [vmem:[%s1 + $0xc] sm:$0xf]
        %v240 = vunpack.c.l.b16 %v232
        %v241 = vunpack.c.l.b16 %v233
        %v242 = vunpack.c.l.b16 %v234
        %v243 = vunpack.c.l.b16 %v235
        %v244 = vpack.c.b16 %v241, %v240
        %v245 = vpack.c.b16 %v243, %v242
        %vm248 = vcmask 261120
        %v250 = vsel %vm248, %v231, 0
        %252 = vmatprep.subr.bf16.mxu0 0
        %253 = vmatpush1.bf16.msra.mxu0 %v244
        %254 = vmatprep.subr.bf16.mxu0 0
        %255 = vmatpush1.bf16.msra.mxu0 %v245
        %256 = vmatprep.subr.bf16.mxu0 0
        %257 = vmatpush1.bf16.msra.mxu0 0
        %258 = vmatprep.subr.bf16.mxu0 0
        %259 = vmatpush1.bf16.msra.mxu0 0
        %260 = vmatprep.subr.bf16.mxu0 0
        %261 = vmatpush1.bf16.msra.mxu0 0
        %262 = vmatprep.subr.bf16.mxu0 0
        %263 = vmatpush1.bf16.msra.mxu0 0
        %264 = vmatprep.subr.bf16.mxu0 0
        %265 = vmatpush1.bf16.msra.mxu0 0
        %266 = vmatprep.subr.bf16.mxu0 0
        %267 = vmatpush1.bf16.msra.mxu0 0
        %268 = vmatprep.subr.bf16.mxu0 0
        %269 = vmatpush1.bf16.msra.mxu0 0
        %270 = vmatprep.subr.bf16.mxu0 0
        %271 = vmatpush1.bf16.msra.mxu0 0
        %272 = vmatprep.subr.bf16.mxu0 0
        %273 = vmatpush1.bf16.msra.mxu0 0
        %274 = vmatprep.subr.bf16.mxu0 0
        %275 = vmatpush1.bf16.msra.mxu0 0
        %276 = vmatprep.subr.bf16.mxu0 0
        %277 = vmatpush1.bf16.msra.mxu0 0
        %278 = vmatprep.subr.bf16.mxu0 0
        %279 = vmatpush1.bf16.msra.mxu0 0
        %280 = vmatprep.subr.bf16.mxu0 0
        %281 = vmatpush1.bf16.msra.mxu0 0
        %282 = vmatprep.subr.bf16.mxu0 0
        %283 = vmatpush1.bf16.msra.mxu0 0
        %284 = vmatprep.mubr.bf16.mxu0 0
        %285 = vmatmul.mubr.bf16.gmra.mrb[0].mxu0 %v250
        %v286 = vpop.f32.mrb[0].mxu0
        %v287 = vadd.f32 0.0, %v286
        %v288 = vpop.f32.mrb[0].mxu0
        %v289 = vpop.f32.mrb[0].mxu0
        %v290 = vpop.f32.mrb[0].mxu0
        %291 = vdwg.mxu0
        %v292 = vld [vmem:[%s229] sm:$0xff]
        %v293 = vand.u32 %v292, 1
        %vm294 = vcmp.gt.s32.totalorder %v293, 0
        %v295 = vand.u32 %v292, 3
        %vm296 = vcmp.eq.s32.totalorder %v295, 3
        %v297 = vand.u32 %v292, 4
        %vm298 = vcmp.gt.s32.totalorder %v297, 0
        %v299 = vsel %vm298, 1.0, 0.0
        %v300 = vld [vmem:[%s2] sm:$0x1]
        %v302 = vlaneseq
        %v303 = vshrl.u32 %v302, 7
        %v304 = vsub.s32 0, %v303
        %v305 = vrot.slane %v300, %v304
        %v307 = vadd.f32 %v287, %v305
        %v308 = vsel %vm294, %v307, -inf
        %310 = vrot.lane.b32.xlu0 %v307, 127
        %v311 = vpop.permute.xlu0 %310
        %v313 = vsel %vm294, %v311, -inf
        %314 = vrot.lane.b32.xlu0 %v307, 126
        %v315 = vpop.permute.xlu0 %314
        %v317 = vsel %vm294, %v315, 0.0
        %v318 = vsel %vm294, 0.0, 1.0
        %v319 = vlaneseq
        %v320 = vand.u32 %v319, 127
        %v321 = vlaneseq
        %v322 = vshrl.u32 %v321, 7
        %vm323 = vcmp.eq.s32.totalorder %v320, 0
        %vm324 = vcmp.eq.s32.totalorder %v320, 1
        %326 = vset.pattern.permute.xlu0 0
        %327 = vperm.xlu0 %326, %v318
        %v328 = vpop.permute.xlu0 %327
        %v330 = vsel %vm324, %v328, 0.0
        %332 = vset.pattern.permute.xlu0 0
        %333 = vperm.xlu0 %332, %v317
        %v334 = vpop.permute.xlu0 %333
        %v336 = vsel %vm323, %v334, %v330
        %v337 = vrot.slane %v336, 7
        %vm338 = vcmp.ge.s32.totalorder %v322, 1
        %v339 = vsel %vm338, %v337, 0.0
        %v340 = vadd.f32 %v336, %v339
        %v341 = vrot.slane %v340, 6
        %vm342 = vcmp.ge.s32.totalorder %v322, 2
        %v343 = vsel %vm342, %v341, 0.0
        %v344 = vadd.f32 %v340, %v343
        %v345 = vrot.slane %v344, 4
        %vm346 = vcmp.ge.s32.totalorder %v322, 4
        %v347 = vsel %vm346, %v345, 0.0
        %v348 = vadd.f32 %v344, %v347
        %vm349 = vcmp.gt.f32.partialorder %v348, 0.5
        %351 = vrot.lane.b32.xlu0 %v348, 1
        %v352 = vpop.permute.xlu0 %351
        %v354 = vsel %vm349, -inf, %v352
        %355 = vrot.lane.b32.xlu0 %v318, 1
        %v356 = vpop.permute.xlu0 %355
        %v358 = vsub.f32 %v348, %v356
        %vm359 = vcmp.gt.f32.partialorder %v358, 0.5
        %v360 = vsub.f32 %v348, %v317
        %362 = vrot.lane.b32.xlu0 %v360, 1
        %v363 = vpop.permute.xlu0 %362
        %v365 = vsel %vm359, -inf, %v363
        %367 = vrot.lane.b32.xlu0 %v365, 127
        %v368 = vpop.permute.xlu0 %367
        %v370 = vsub.f32 %v308, %v368
        %372 = vrot.lane.b32.xlu0 %v354, 127
        %v373 = vpop.permute.xlu0 %372
        %v375 = vadd.f32 %v313, %v373
        %377 = vset.pattern.permute.xlu0 0
        %378 = vperm.xlu0 %377, %v299
        %v379 = vpop.permute.xlu0 %378
        %v381 = vsel %vm324, %v379, 0.0
        %383 = vset.pattern.permute.xlu0 0
        %384 = vperm.xlu0 %383, %v375
        %v385 = vpop.permute.xlu0 %384
        %v387 = vsel %vm323, %v385, %v381
        %vm388 = vcmp.gt.f32.partialorder %v387, 0.5
        %v389 = vsel %vm388, 1, 0
        %390 = vrot.lane.b32.xlu0 %v389, 127
        %v391 = vpop.permute.xlu0 %390
        %vm392 = vcmp.ne.s32.totalorder %v391, 0
        %vm393 = vmand %vm296, %vm392
        %vm394 = vcmp.lt.s32.totalorder %v322, 8
        %vm395 = vmand %vm393, %vm394
        %v396 = vadd.f32 %v370, %v387
        %v397 = vsel %vm395, %v396, -inf
        %399 = vset.pattern.permute.xlu0 0
        %400 = vperm.xlu0 %399, %v397
        %v401 = vpop.permute.xlu0 %400
        %v403 = vsel %vm323, %v401, -inf
        %v404 = vrot.slane %v387, 1
        %vm405 = vcmp.gt.f32.partialorder %v404, 0.5
        %v406 = vsel %vm405, 1, 0
        %407 = vrot.lane.b32.xlu0 %v406, 127
        %v408 = vpop.permute.xlu0 %407
        %vm409 = vcmp.ne.s32.totalorder %v408, 0
        %vm410 = vmand %vm296, %vm409
        %vm411 = vcmp.lt.s32.totalorder %v322, 7
        %vm412 = vmand %vm410, %vm411
        %v413 = vadd.f32 %v370, %v404
        %v414 = vsel %vm412, %v413, -inf
        %416 = vset.pattern.permute.xlu0 0
        %417 = vperm.xlu0 %416, %v414
        %v418 = vpop.permute.xlu0 %417
        %v420 = vsel %vm324, %v418, %v403
        %v421 = vrot.slane %v387, 2
        %vm422 = vcmp.gt.f32.partialorder %v421, 0.5
        %v423 = vsel %vm422, 1, 0
        %424 = vrot.lane.b32.xlu0 %v423, 127
        %v425 = vpop.permute.xlu0 %424
        %vm426 = vcmp.ne.s32.totalorder %v425, 0
        %vm427 = vmand %vm296, %vm426
        %vm428 = vcmp.lt.s32.totalorder %v322, 6
        %vm429 = vmand %vm427, %vm428
        %v430 = vadd.f32 %v370, %v421
        %v431 = vsel %vm429, %v430, -inf
        %vm432 = vcmp.eq.s32.totalorder %v320, 2
        %434 = vset.pattern.permute.xlu0 0
        %435 = vperm.xlu0 %434, %v431
        %v436 = vpop.permute.xlu0 %435
        %v438 = vsel %vm432, %v436, %v420
        %v439 = vrot.slane %v387, 3
        %vm440 = vcmp.gt.f32.partialorder %v439, 0.5
        %v441 = vsel %vm440, 1, 0
        %442 = vrot.lane.b32.xlu0 %v441, 127
        %v443 = vpop.permute.xlu0 %442
        %vm444 = vcmp.ne.s32.totalorder %v443, 0
        %vm445 = vmand %vm296, %vm444
        %vm446 = vcmp.lt.s32.totalorder %v322, 5
        %vm447 = vmand %vm445, %vm446
        %v448 = vadd.f32 %v370, %v439
        %v449 = vsel %vm447, %v448, -inf
        %vm450 = vcmp.eq.s32.totalorder %v320, 3
        %452 = vset.pattern.permute.xlu0 0
        %453 = vperm.xlu0 %452, %v449
        %v454 = vpop.permute.xlu0 %453
        %v456 = vsel %vm450, %v454, %v438
        %v457 = vrot.slane %v387, 4
        %vm458 = vcmp.gt.f32.partialorder %v457, 0.5
        %v459 = vsel %vm458, 1, 0
        %460 = vrot.lane.b32.xlu0 %v459, 127
        %v461 = vpop.permute.xlu0 %460
        %vm462 = vcmp.ne.s32.totalorder %v461, 0
        %vm463 = vmand %vm296, %vm462
        %vm464 = vcmp.lt.s32.totalorder %v322, 4
        %vm465 = vmand %vm463, %vm464
        %v466 = vadd.f32 %v370, %v457
        %v467 = vsel %vm465, %v466, -inf
        %vm468 = vcmp.eq.s32.totalorder %v320, 4
        %470 = vset.pattern.permute.xlu0 0
        %471 = vperm.xlu0 %470, %v467
        %v472 = vpop.permute.xlu0 %471
        %v474 = vsel %vm468, %v472, %v456
        %475 = vst [vmem:[%s225] sm:$0xff] %v474
        %s476 = sand.u32 %s123, 1
        %s477 = scalar_lea.sflag [#allocation4], %s476
        %s478 = sand.u32 %s123, 1
        %s479 = smul.addr %s478, 8
        %s480 = scalar_lea.vmem [#allocation5], %s479
        // Predicated region
        $region41: #{tpu_custom_call.1} parent=35 // pred_check
          %p481 = pneg %p133
        $region42: #{tpu_custom_call.1} parent=35 // pred_check_branch
          %483 = sbr.rel (%p481) target = $region44
        $region43: #{tpu_custom_call.1} parent=35 // pred_region
          %s485 = ssub.s32 128, 128
          %486 = vsyncadd %s477, %s485
          %s487 = smul.addr %s21, 128
          %s488 = scalar_lea.hbm %s4, %s487
          %s490 = sshll.u32 %s480, 4
          %s491 = int_to_ptr.vmem [resolvable:$true] %s490
          %493 = dma.vmem_to_hbm [thread:$0]  %s491, 128, %s488, %s477
        $region44: #{tpu_custom_call.1} parent=35 // pred_fallthru
          _
      $region36: #{tpu_custom_call.1} parent=5 // pred_fallthru
        _
      %p494 = scmp.le.s32.totalorder 2, %s16
      // Predicated region
      $region45: #{tpu_custom_call.1} parent=5 // pred_check
        %p495 = pneg %p494
      $region46: #{tpu_custom_call.1} parent=5 // pred_check_branch
        %497 = sbr.rel (%p495) target = $region48
      $region47: #{tpu_custom_call.1} parent=5 // pred_region
        %s498 = ssub.s32 %s16, 2
        // Predicated region
        $region49: #{tpu_custom_call.1} parent=47 // pred_check
          %p499 = pneg %p139
        $region50: #{tpu_custom_call.1} parent=47 // pred_check_branch
          %501 = sbr.rel (%p499) target = $region52
        $region51: #{tpu_custom_call.1} parent=47 // pred_region
          %s502 = sand.u32 %s124, 1
          %s503 = scalar_lea.sflag [#allocation4], %s502
          %s504 = sand.u32 %s124, 1
          %s505 = smul.addr %s504, 8
          %s506 = scalar_lea.vmem [#allocation5], %s505
          %507 = dma.done %s503, 128
        $region52: #{tpu_custom_call.1} parent=47 // pred_fallthru
          _
      $region48: #{tpu_custom_call.1} parent=5 // pred_fallthru
        _
    $region6: #{tpu_custom_call.1} parent=1 // loop_footer
      %s20 = sadd.s32 1, %s16
    $region7: #{tpu_custom_call.1} parent=1 // loop_footer_branch
      %15 = sbr.rel target = $region3
    $region8: #{tpu_custom_call.1} parent=1 // loop_exit
      _
    %508 = vsyncpa [#allocation3], 1
    %s509 = scalar_lea.sflag [#allocation3], 1
    %510 = vsyncpa %s509, 1
    %511 = vsyncpa [#allocation4], 1
    %s512 = scalar_lea.sflag [#allocation4], 1
    %513 = vsyncpa %s512, 1

</llo_original>
